<compile_context>
chip_gen: v6e
topology: v6e:2x2x1
jax: 0.10.0
libtpu: 0.0.40
codegen_flags: <defaults>
</compile_context>

<pallas_src>
import jax
import jax.numpy as jnp
from jax import lax
from jax.experimental import pallas as pl
from jax.experimental.pallas import tpu as pltpu


def _round_up(x: int, m: int) -> int:
    return ((x + m - 1) // m) * m


def _sublane(dtype) -> int:
    """Sublane packing multiple for the second-to-last block dim."""
    return {4: 8, 2: 16, 1: 32}.get(jnp.dtype(dtype).itemsize, 8)


def _pick_divisor_tile(padded: int, candidates) -> int:
    """Largest candidate tile that divides `padded` (padded is a mult. of 128)."""
    for c in candidates:
        if padded % c == 0:
            return c
    return 128


# --------------------------------------------------------------------------
# Path 1 kernel: whole weight block resident, one matmul per output tile.
# --------------------------------------------------------------------------
def _resident_kernel(x_ref, w_ref, b_ref, o_ref):
    """x_ref: (tm, Dp); w_ref: (tn, Dp) PyTorch (C,D) layout; b_ref: (1, tn)."""
    acc = lax.dot_general(
        x_ref[...], w_ref[...],
        dimension_numbers=(((1,), (1,)), ((), ())),
        preferred_element_type=jnp.float32)
    o_ref[...] = (acc + b_ref[...].astype(jnp.float32)).astype(o_ref.dtype)


# --------------------------------------------------------------------------
# Path 2 kernel: 3-D tiled, accumulate directly into the resident f32 output.
# --------------------------------------------------------------------------
def _tiled_kernel(x_ref, w_ref, b_ref, o_ref):
    """x_ref: (tm, tk); w_ref: (tn, tk); b_ref: (1, tn); o_ref: (tm, tn) f32."""
    k = pl.program_id(2)

    @pl.when(k == 0)
    def _():
        # Fold the bias into the output-tile init (output block index is
        # constant in k, so the tile stays resident across the K axis).
        o_ref[...] = jnp.broadcast_to(b_ref[...], o_ref.shape).astype(o_ref.dtype)

    o_ref[...] += lax.dot_general(
        x_ref[...], w_ref[...],
        dimension_numbers=(((1,), (1,)), ((), ())),
        preferred_element_type=jnp.float32)


@jax.jit
def classification_head(x, weight, bias):
    """x: (B, D); weight: (C, D) PyTorch layout; bias: (C,). Returns (B, C)."""
    B, D = x.shape
    C = weight.shape[0]
    out_dtype = x.dtype
    sub = _sublane(x.dtype)

    Cp = _round_up(C, 128)
    Dp = _round_up(D, 128)

    x_item = jnp.dtype(x.dtype).itemsize
    w_item = jnp.dtype(weight.dtype).itemsize
    o_item = jnp.dtype(out_dtype).itemsize
    w_bytes = Cp * Dp * w_item

    RESIDENT_LIMIT = 8 * 1024 * 1024    # keep the whole weight in VMEM below this
    VMEM_BUDGET = 28 * 1024 * 1024      # headroom under the 32 MiB default scope

    # ---------------- Path 1: weight-resident ----------------
    use_resident = w_bytes <= RESIDENT_LIMIT
    if use_resident:
        avail = VMEM_BUDGET - 2 * w_bytes            # weight is double-buffered
        per_row = 2 * (Dp * x_item + Cp * o_item)    # x + out, double-buffered
        tm_max = (avail // per_row) // sub * sub
        if tm_max < sub:
            use_resident = False

    if use_resident:
        tm = int(min(512, _round_up(B, sub), tm_max))
        Bp = _round_up(B, tm)
        ni = Bp // tm
        # v7x megacore: guarantee >=2 parallel blocks when B is tiny by
        # splitting the weight into two column blocks.
        if ni >= 2 or Cp % 256 != 0:
            nj, tn = 1, Cp
        else:
            nj, tn = 2, Cp // 2

        xp = x if (Bp, Dp) == (B, D) else jnp.pad(x, ((0, Bp - B), (0, Dp - D)))
        wp = weight if (Cp, Dp) == (C, D) else jnp.pad(
            weight, ((0, Cp - C), (0, Dp - D)))
        b2d = jnp.pad(bias, (0, Cp - C)).reshape(1, Cp)

        out = pl.pallas_call(
            _resident_kernel,
            out_shape=jax.ShapeDtypeStruct((Bp, Cp), out_dtype),
            grid_spec=pltpu.PrefetchScalarGridSpec(
                num_scalar_prefetch=0,
                # Weight-block axis is outermost: each weight block is fetched
                # once and stays resident over the whole inner batch loop.
                grid=(nj, ni),
                in_specs=[
                    pl.BlockSpec((tm, Dp), lambda j, i: (i, 0)),   # x
                    pl.BlockSpec((tn, Dp), lambda j, i: (j, 0)),   # weight (C,D)
                    pl.BlockSpec((1, tn), lambda j, i: (0, j)),    # bias
                ],
                out_specs=pl.BlockSpec((tm, tn), lambda j, i: (i, j)),
            ),
            compiler_params=pltpu.CompilerParams(
                dimension_semantics=("parallel", "parallel"),
            ),
        )(xp, wp, b2d)
        return out[:B, :C]

    # ---------------- Path 2: tiled 3-D matmul ----------------
    tn = _pick_divisor_tile(Cp, (512, 256, 128))
    tk = _pick_divisor_tile(Dp, (1024, 512, 256, 128))
    tm = int(min(1024, _round_up(B, sub)))
    Bp = _round_up(B, tm)

    # v7x megacore: make sure a parallel axis has >=2 blocks when possible.
    if (Bp // tm) * (Cp // tn) < 2:
        if tn >= 256:
            tn //= 2
        elif tm >= 2 * sub:
            tm //= 2
            Bp = _round_up(B, tm)

    xp = x if (Bp, Dp) == (B, D) else jnp.pad(x, ((0, Bp - B), (0, Dp - D)))
    wp = weight if (Cp, Dp) == (C, D) else jnp.pad(
        weight, ((0, Cp - C), (0, Dp - D)))
    b2d = jnp.pad(bias, (0, Cp - C)).reshape(1, Cp)

    grid = (Bp // tm, Cp // tn, Dp // tk)

    out = pl.pallas_call(
        _tiled_kernel,
        out_shape=jax.ShapeDtypeStruct((Bp, Cp), jnp.float32),
        grid_spec=pltpu.PrefetchScalarGridSpec(
            num_scalar_prefetch=0,
            grid=grid,
            in_specs=[
                pl.BlockSpec((tm, tk), lambda i, j, k: (i, k)),   # x
                pl.BlockSpec((tn, tk), lambda i, j, k: (j, k)),   # weight (C,D)
                pl.BlockSpec((1, tn), lambda i, j, k: (0, j)),    # bias
            ],
            out_specs=pl.BlockSpec((tm, tn), lambda i, j, k: (i, j)),
        ),
        compiler_params=pltpu.CompilerParams(
            dimension_semantics=("parallel", "parallel", "arbitrary"),
        ),
    )(xp, wp, b2d)

    out = out[:B, :C]
    return out if out.dtype == out_dtype else out.astype(out_dtype)


if __name__ == "__main__":
    key = jax.random.PRNGKey(0)

    # --- Small shapes consistent with the module forward: (batch, input_dim).
    batch, input_dim, num_classes = 2, 32, 10
    kx, kw, kb = jax.random.split(key, 3)
    bound = 1.0 / (input_dim ** 0.5)
    x = jax.random.normal(kx, (batch, input_dim), dtype=jnp.float32)
    weight = jax.random.uniform(
        kw, (num_classes, input_dim), minval=-bound, maxval=bound,
        dtype=jnp.float32)
    bias = jax.random.uniform(
        kb, (num_classes,), minval=-bound, maxval=bound, dtype=jnp.float32)

    out = jax.block_until_ready(classification_head(x, weight, bias))
    ref = jnp.matmul(x, weight.T, precision=lax.Precision.HIGHEST) + bias
    assert out.shape == (batch, num_classes)
    assert jnp.allclose(out, ref, atol=1e-5, rtol=1e-5)

    # --- Larger check exercising the tiled path (weight > resident limit)
    #     and multi-step K accumulation into the resident output tile.
    B2, D2, C2 = 64, 2048, 1536
    k2x, k2w, k2b = jax.random.split(jax.random.PRNGKey(1), 3)
    bound2 = 1.0 / (D2 ** 0.5)
    x2 = jax.random.normal(k2x, (B2, D2), dtype=jnp.float32)
    w2 = jax.random.uniform(k2w, (C2, D2), minval=-bound2, maxval=bound2,
                            dtype=jnp.float32)
    b2 = jax.random.uniform(k2b, (C2,), minval=-bound2, maxval=bound2,
                            dtype=jnp.float32)
    out2 = jax.block_until_ready(classification_head(x2, w2, b2))
    ref2 = jnp.matmul(x2, w2.T, precision=lax.Precision.HIGHEST) + b2
    assert out2.shape == (B2, C2)
    assert jnp.allclose(out2, ref2, atol=1e-4, rtol=1e-4)

    print("KERNEL_OK")
</pallas_src>

<mosaic_0001>
module attributes {stable_mosaic.version = 11 : i64} {
  func.func @_resident_kernel(%arg0: i32, %arg1: i32, %arg2: memref<8x128xf32, #tpu.memory_space<vmem>>, %arg3: memref<128x128xf32, #tpu.memory_space<vmem>>, %arg4: memref<1x128xf32, #tpu.memory_space<vmem>>, %arg5: memref<8x128xf32, #tpu.memory_space<vmem>>) attributes {dimension_semantics = [#tpu.dimension_semantics<parallel>, #tpu.dimension_semantics<parallel>], iteration_bounds = array<i64: 1, 1>, scalar_prefetch = 0 : i64, scratch_operands = 0 : i64, tpu.core_type = #tpu.core_type<tc>, window_params = [{transform_indices = @transform_0, window_bounds = array<i64: 8, 128>}, {transform_indices = @transform_1, window_bounds = array<i64: 128, 128>}, {transform_indices = @transform_2, window_bounds = array<i64: 1, 128>}, {transform_indices = @transform_3, window_bounds = array<i64: 8, 128>}]} {
    %c0 = arith.constant 0 : index
    %c0_0 = arith.constant 0 : index
    %0 = vector.load %arg2[%c0, %c0_0] : memref<8x128xf32, #tpu.memory_space<vmem>>, vector<8x128xf32>
    %c0_1 = arith.constant 0 : index
    %c0_2 = arith.constant 0 : index
    %1 = vector.load %arg3[%c0_1, %c0_2] : memref<128x128xf32, #tpu.memory_space<vmem>>, vector<128x128xf32>
    %cst = arith.constant dense<0.000000e+00> : vector<8x128xf32>
    %2 = tpu.matmul %0, %1, %cst {dimension_numbers = #tpu.dot_dimension_numbers<[1], [1], [0], [0], [0, 0, 1, 0], [], []>} : vector<8x128xf32>, vector<128x128xf32>, vector<8x128xf32> -> vector<8x128xf32>
    %c0_3 = arith.constant 0 : index
    %c0_4 = arith.constant 0 : index
    %3 = vector.load %arg4[%c0_3, %c0_4] : memref<1x128xf32, #tpu.memory_space<vmem>>, vector<1x128xf32>
    %4 = vector.broadcast %3 : vector<1x128xf32> to vector<8x128xf32>
    %5 = arith.addf %2, %4 : vector<8x128xf32>
    %c0_5 = arith.constant 0 : index
    %c0_6 = arith.constant 0 : index
    %6 = vector.load %arg5[%c0_5, %c0_6] : memref<8x128xf32, #tpu.memory_space<vmem>>, vector<8x128xf32>
    tpu.vector_store %arg5[%c0_5, %c0_6], %5 {strides = array<i32>} : memref<8x128xf32, #tpu.memory_space<vmem>>, vector<8x128xf32>,
    return
  }
  func.func @transform_0(%arg0: i32, %arg1: i32) -> (i32, i32) {
    %c0_i32 = arith.constant 0 : i32
    %c0_i32_0 = arith.constant 0 : i32
    return %arg1, %c0_i32 : i32, i32
  }
  func.func @transform_1(%arg0: i32, %arg1: i32) -> (i32, i32) {
    %c0_i32 = arith.constant 0 : i32
    %c0_i32_0 = arith.constant 0 : i32
    return %arg0, %c0_i32 : i32, i32
  }
  func.func @transform_2(%arg0: i32, %arg1: i32) -> (i32, i32) {
    %c0_i32 = arith.constant 0 : i32
    %c0_i32_0 = arith.constant 0 : i32
    return %c0_i32, %arg0 : i32, i32
  }
  func.func @transform_3(%arg0: i32, %arg1: i32) -> (i32, i32) {
    %c0_i32 = arith.constant 0 : i32
    return %arg1, %arg0 : i32, i32
  }
}

</mosaic_0001>

<llo_original>
// kernel: classification_head.1
$region0: #{classification_head.1}
  #allocation0 [shape = 'u32[]', space=smem, size = 0x4, offset = 0x4, fixed_abs, tag = 'smem constant byte address 0x4 - core index']
  #allocation1 [shape = 'u32[144,128]{1,0:T(1,128)}', space=vmem, size = 0x12000, scoped, tag = 'internal scratch']
  %s0 = inlined_call_operand.vmem [shape: f32[8,128], index: 0, kind: input, shape index: {}]
  %s1 = inlined_call_operand.vmem [shape: f32[128,128], index: 1, kind: input, shape index: {}]
  %s2 = inlined_call_operand.vmem [shape: f32[1,128], index: 2, kind: input, shape index: {}]
  %s3 = inlined_call_operand.vmem [shape: f32[8,128], index: 3, kind: output, shape index: {}]
  %s4 = sld [smem:[#allocation0]]
  $region22: #{classification_head.1} parent=0
    _
  %s6 = ssub.s32 1, %s4
  %s7 = scalar_select 0, %s6, %s4
  // Predicated region
  $region2: #{classification_head.1} parent=0 // pred_check
    _
  $region3: #{classification_head.1} parent=0 // pred_check_branch
    %9 = sbr.rel (0) target = $region5
  $region4: #{classification_head.1} parent=0 // pred_region
    _
  $region5: #{classification_head.1} parent=0 // pred_fallthru
    _
  // Predicated region
  $region6: #{classification_head.1} parent=0 // pred_check
    _
  $region7: #{classification_head.1} parent=0 // pred_check_branch
    %11 = sbr.rel (0) target = $region9
  $region8: #{classification_head.1} parent=0 // pred_region
    _
  $region9: #{classification_head.1} parent=0 // pred_fallthru
    _
  // Predicated region
  $region10: #{classification_head.1} parent=0 // pred_check
    _
  $region11: #{classification_head.1} parent=0 // pred_check_branch
    %13 = sbr.rel (0) target = $region13
  $region12: #{classification_head.1} parent=0 // pred_region
    _
  $region13: #{classification_head.1} parent=0 // pred_fallthru
    _
  %v14 = vld [vmem:[%s0] sm:$0xff]
  %v15 = vld [vmem:[%s1] sm:$0xff]
  %v16 = vld [vmem:[%s1 + $0x8] sm:$0xff]
  %v17 = vld [vmem:[%s1 + $0x10] sm:$0xff]
  %v18 = vld [vmem:[%s1 + $0x18] sm:$0xff]
  %v19 = vld [vmem:[%s1 + $0x20] sm:$0xff]
  %v20 = vld [vmem:[%s1 + $0x28] sm:$0xff]
  %v21 = vld [vmem:[%s1 + $0x30] sm:$0xff]
  %v22 = vld [vmem:[%s1 + $0x38] sm:$0xff]
  %v23 = vld [vmem:[%s1 + $0x40] sm:$0xff]
  %v24 = vld [vmem:[%s1 + $0x48] sm:$0xff]
  %v25 = vld [vmem:[%s1 + $0x50] sm:$0xff]
  %v26 = vld [vmem:[%s1 + $0x58] sm:$0xff]
  %v27 = vld [vmem:[%s1 + $0x60] sm:$0xff]
  %v28 = vld [vmem:[%s1 + $0x68] sm:$0xff]
  %v29 = vld [vmem:[%s1 + $0x70] sm:$0xff]
  %v30 = vld [vmem:[%s1 + $0x78] sm:$0xff]
  %v31 = vld [vmem:[%s2] sm:$0x1]
  %v33 = vlaneseq
  %v34 = vshrl.u32 %v33, 7
  %v35 = vsub.s32 0, %v34
  %v36 = vrot.slane %v31, %v35
  %38 = vmatprep.subr.mxu0 0.0
  %39 = vmatpush1.xpose.msra.mxu0 %v30
  %40 = vmatprep.subr.mxu0 0.0
  %41 = vmatpush1.xpose.msra.mxu0 %v29
  %42 = vmatprep.subr.mxu0 0.0
  %43 = vmatpush1.xpose.msra.mxu0 %v28
  %44 = vmatprep.subr.mxu0 0.0
  %45 = vmatpush1.xpose.msra.mxu0 %v27
  %46 = vmatprep.subr.mxu0 0.0
  %47 = vmatpush1.xpose.msra.mxu0 %v26
  %48 = vmatprep.subr.mxu0 0.0
  %49 = vmatpush1.xpose.msra.mxu0 %v25
  %50 = vmatprep.subr.mxu0 0.0
  %51 = vmatpush1.xpose.msra.mxu0 %v24
  %52 = vmatprep.subr.mxu0 0.0
  %53 = vmatpush1.xpose.msra.mxu0 %v23
  %54 = vmatprep.subr.mxu0 0.0
  %55 = vmatpush1.xpose.msra.mxu0 %v22
  %56 = vmatprep.subr.mxu0 0.0
  %57 = vmatpush1.xpose.msra.mxu0 %v21
  %58 = vmatprep.subr.mxu0 0.0
  %59 = vmatpush1.xpose.msra.mxu0 %v20
  %60 = vmatprep.subr.mxu0 0.0
  %61 = vmatpush1.xpose.msra.mxu0 %v19
  %62 = vmatprep.subr.mxu0 0.0
  %63 = vmatpush1.xpose.msra.mxu0 %v18
  %64 = vmatprep.subr.mxu0 0.0
  %65 = vmatpush1.xpose.msra.mxu0 %v17
  %66 = vmatprep.subr.mxu0 0.0
  %67 = vmatpush1.xpose.msra.mxu0 %v16
  %68 = vmatprep.subr.mxu0 0.0
  %69 = vmatpush1.xpose.msra.mxu0 %v15
  %70 = vmatprep.subr.mxu0 0.0
  %71 = vmatpush2.xpose.msra.mxu0 0.0
  %72 = vmatprep.subr.mxu0 0.0
  %73 = vmatpush2.xpose.msra.mxu0 0.0
  %74 = vmatprep.subr.mxu0 0.0
  %75 = vmatpush2.xpose.msra.mxu0 0.0
  %76 = vmatprep.subr.mxu0 0.0
  %77 = vmatpush2.xpose.msra.mxu0 0.0
  %78 = vmatprep.subr.mxu0 0.0
  %79 = vmatpush2.xpose.msra.mxu0 0.0
  %80 = vmatprep.subr.mxu0 0.0
  %81 = vmatpush2.xpose.msra.mxu0 0.0
  %82 = vmatprep.subr.mxu0 0.0
  %83 = vmatpush2.xpose.msra.mxu0 0.0
  %84 = vmatprep.subr.mxu0 0.0
  %85 = vmatpush2.xpose.msra.mxu0 0.0
  %86 = vmatprep.subr.mxu0 0.0
  %87 = vmatpush2.xpose.msra.mxu0 0.0
  %88 = vmatprep.subr.mxu0 0.0
  %89 = vmatpush2.xpose.msra.mxu0 0.0
  %90 = vmatprep.subr.mxu0 0.0
  %91 = vmatpush2.xpose.msra.mxu0 0.0
  %92 = vmatprep.subr.mxu0 0.0
  %93 = vmatpush2.xpose.msra.mxu0 0.0
  %94 = vmatprep.subr.mxu0 0.0
  %95 = vmatpush2.xpose.msra.mxu0 0.0
  %96 = vmatprep.subr.mxu0 0.0
  %97 = vmatpush2.xpose.msra.mxu0 0.0
  %98 = vmatprep.subr.mxu0 0.0
  %99 = vmatpush2.xpose.msra.mxu0 0.0
  %100 = vmatprep.subr.mxu0 0.0
  %101 = vmatpush2.xpose.msra.mxu0 0.0
  %102 = vmatprep.mubr.f32.mxu0 0.0
  %103 = vmatmul.mubr.f32.gmra.mxu0 %v14
  %v104 = vpop.f32.mrf.mxu0
  %v105 = vadd.f32 %v36, %v104
  %v106 = vpop.f32.mrf.mxu0
  %107 = vdwg.mxu0
  %108 = vst [vmem:[%s3] sm:$0xff] %v105
  // Predicated region
  $region14: #{classification_head.1} parent=0 // pred_check
    _
  $region15: #{classification_head.1} parent=0 // pred_check_branch
    %110 = sbr.rel (0) target = $region17
  $region16: #{classification_head.1} parent=0 // pred_region
    _
  $region17: #{classification_head.1} parent=0 // pred_fallthru
    _
  // Predicated region
  $region18: #{classification_head.1} parent=0 // pred_check
    _
  $region19: #{classification_head.1} parent=0 // pred_check_branch
    %112 = sbr.rel (0) target = $region21
  $region20: #{classification_head.1} parent=0 // pred_region
    _
  $region21: #{classification_head.1} parent=0 // pred_fallthru
    _

</llo_original>
